<compile_context>
chip_gen: v6e
topology: v6e:2x2x1
jax: 0.10.0
libtpu: 0.0.40
codegen_flags: <defaults>
</compile_context>

<pallas_src>
import math

import jax
import jax.numpy as jnp
from jax.experimental import pallas as pl
from jax.experimental.pallas import tpu as pltpu


_VMEM_LIMIT_BYTES = 32 * 1024 * 1024          # safe on v5e/v6e (128 MiB) and v7x (64 MiB)
_TARGET_BLOCK_BYTES = 1 << 20                 # ~1 MiB blocks: ~85%+ of HBM roofline


# --------------------------------------------------------------------------
# Kernels
# --------------------------------------------------------------------------
def _diff1_lane_kernel(u_ref, w_ref, o_ref):
    """diff axis == last axis. Block is (block_rows, n), n on lanes.

    NOTE: the last block dim MUST equal the full periodic extent n, otherwise
    the in-block roll is no longer a periodic wrap. Never block this axis.
    """
    u = u_ref[...].astype(jnp.float32)           # (block_rows, n)
    w = w_ref[...]                               # (3, n) float32
    n = u.shape[1]
    u_m = pltpu.roll(u, shift=1, axis=1)         # u[..., (i-1) % n]
    u_p = pltpu.roll(u, shift=n - 1, axis=1)     # u[..., (i+1) % n]  (roll(-1) == roll(n-1))
    res = u_m * w[0:1, :] + u * w[1:2, :] + u_p * w[2:3, :]
    o_ref[...] = res.astype(o_ref.dtype)


def _diff1_sublane_kernel(u_ref, w_ref, o_ref):
    """diff axis is NOT last. Block is (block_b, n, C): n on sublanes, C on lanes.

    Avoids the HBM transpose round-trip a moveaxis would cost; neighbours come
    from a static roll along the (full-extent) sublane axis.
    """
    u = u_ref[...].astype(jnp.float32)           # (block_b, n, C)
    w = w_ref[...]                               # (3, n, 1) float32
    u_m = jnp.roll(u, 1, axis=1)                 # periodic wrap: axis 1 is the full n
    u_p = jnp.roll(u, -1, axis=1)
    res = u_m * w[0] + u * w[1] + u_p * w[2]     # (n,1) broadcasts over lanes
    o_ref[...] = res.astype(o_ref.dtype)


# --------------------------------------------------------------------------
# Block sizing helpers (byte-targeted, 8-row aligned, keep >=4 grid steps)
# --------------------------------------------------------------------------
def _choose_block_rows(m, bytes_per_row, target_bytes=_TARGET_BLOCK_BYTES,
                       min_grid_steps=4):
    rows = max(8, (target_bytes // max(1, bytes_per_row)) // 8 * 8)
    if m > 8 * min_grid_steps:
        cap = -(-m // min_grid_steps)            # ceil(m / min_grid_steps)
        cap = -(-cap // 8) * 8                   # round up to multiple of 8
        rows = min(rows, cap)
    if rows >= m:
        return m                                 # full extent is always legal
    return rows


def _choose_block_b(B, bytes_per_b, target_bytes=_TARGET_BLOCK_BYTES,
                    min_grid_steps=4):
    bb = max(1, target_bytes // max(1, bytes_per_b))
    bb = min(bb, B)
    if B >= min_grid_steps:
        bb = min(bb, -(-B // min_grid_steps))
    return max(1, bb)


# --------------------------------------------------------------------------
# Wrapper
# --------------------------------------------------------------------------
def make_weights_all(z_vector):
    """Replicates Order2_Diff1_Unstructure_Period.__init__ weight table (n, 3)."""
    n = z_vector.shape[0]
    dz = z_vector[1] - z_vector[0]
    dz_m = jnp.ones((n,), z_vector.dtype) * dz
    dz_p = jnp.ones((n,), z_vector.dtype) * dz
    scale = (dz_m * dz_p) / (dz_m + dz_p)
    w_m = -1.0 / dz_m / dz_m * scale
    w_c = (1.0 / dz_m / dz_m - 1.0 / dz_p / dz_p) * scale
    w_p = 1.0 / dz_p / dz_p * scale
    return jnp.stack([w_m, w_c, w_p], axis=1)    # (n, 3)


def _diff_last_axis(u, w32):
    n = u.shape[-1]
    u2 = u.reshape(-1, n)                        # free: contiguous reshape, no transpose
    m = u2.shape[0]
    itemsize = u.dtype.itemsize
    w = jnp.transpose(w32)                       # (3, n), n on lanes; tiny

    block_rows = _choose_block_rows(m, n * itemsize)
    grid = (pl.cdiv(m, block_rows),)
    cost = pl.CostEstimate(
        flops=int(6 * m * n),
        transcendentals=0,
        bytes_accessed=int(2 * m * n * itemsize + 3 * n * 4),
    )

    out2 = pl.pallas_call(
        _diff1_lane_kernel,
        out_shape=jax.ShapeDtypeStruct((m, n), u.dtype),
        grid=grid,
        in_specs=[
            pl.BlockSpec((block_rows, n), lambda i: (i, 0)),   # last dim = full n (periodicity!)
            pl.BlockSpec((3, n), lambda i: (0, 0)),            # weights resident across grid
        ],
        out_specs=pl.BlockSpec((block_rows, n), lambda i: (i, 0)),
        compiler_params=pltpu.CompilerParams(
            dimension_semantics=("parallel",),
            vmem_limit_bytes=_VMEM_LIMIT_BYTES),
        cost_estimate=cost,
    )(u2, w)
    return out2.reshape(u.shape)


def _diff_middle_axis(u, w32, diff_dim):
    shape = u.shape
    n = shape[diff_dim]
    B = int(math.prod(shape[:diff_dim]))
    C = int(math.prod(shape[diff_dim + 1:]))
    itemsize = u.dtype.itemsize

    u3 = u.reshape(B, n, C)                      # free: contiguous reshape, no transpose
    w3 = jnp.transpose(w32).reshape(3, n, 1)     # n on sublanes, broadcast over lanes

    block_b = _choose_block_b(B, n * C * itemsize)
    grid = (pl.cdiv(B, block_b),)
    cost = pl.CostEstimate(
        flops=int(6 * B * n * C),
        transcendentals=0,
        bytes_accessed=int(2 * B * n * C * itemsize + 3 * n * 4),
    )

    out3 = pl.pallas_call(
        _diff1_sublane_kernel,
        out_shape=jax.ShapeDtypeStruct((B, n, C), u.dtype),
        grid=grid,
        in_specs=[
            pl.BlockSpec((block_b, n, C), lambda i: (i, 0, 0)),  # n, C full (periodicity + lane-dense)
            pl.BlockSpec((3, n, 1), lambda i: (0, 0, 0)),
        ],
        out_specs=pl.BlockSpec((block_b, n, C), lambda i: (i, 0, 0)),
        compiler_params=pltpu.CompilerParams(
            dimension_semantics=("parallel",),
            vmem_limit_bytes=_VMEM_LIMIT_BYTES),
        cost_estimate=cost,
    )(u3, w3)
    return out3.reshape(u.shape)


def order2_diff1_unstructure_period(u, weights_all, total_dim=3, diff_dim=3):
    """Periodic 2nd-order central first-derivative along `diff_dim` of u.

    u schema: (variable, spatial_1, ..., spatial_total_dim); diff_dim in [1, total_dim].
    """
    assert u.ndim == total_dim + 1
    n = weights_all.shape[0]
    assert u.shape[diff_dim] == n
    w32 = weights_all.astype(jnp.float32)        # keep stencil coeffs in f32
    if diff_dim == u.ndim - 1:
        return _diff_last_axis(u, w32)
    return _diff_middle_axis(u, w32, diff_dim)


# --------------------------------------------------------------------------
# Self-test
# --------------------------------------------------------------------------
def _reference(u, weights_all, diff_dim):
    """Pure-JAX replication of the torch forward (einsum over stacked taps)."""
    u_m = jnp.roll(u, 1, axis=diff_dim)
    u_p = jnp.roll(u, -1, axis=diff_dim)
    bshape = [1] * u.ndim
    bshape[diff_dim] = u.shape[diff_dim]
    w = weights_all
    return (u_m * w[:, 0].reshape(bshape)
            + u * w[:, 1].reshape(bshape)
            + u_p * w[:, 2].reshape(bshape)).reshape(u.shape)


if __name__ == "__main__":
    key = jax.random.PRNGKey(0)
    # total_dim=3: u schema (variable, x, y, z)
    V, X, Y, Z = 2, 8, 16, 128
    u = jax.random.normal(key, (V, X, Y, Z), dtype=jnp.float32)

    # Case 1: periodic derivative along the LAST axis (z), diff_dim=3.
    z_vector = jnp.arange(Z, dtype=jnp.float32) * 0.05   # uniform spacing, as in the module
    weights_z = make_weights_all(z_vector)
    out_z = order2_diff1_unstructure_period(u, weights_z, total_dim=3, diff_dim=3)
    out_z = jax.block_until_ready(out_z)
    ref_z = _reference(u, weights_z, diff_dim=3)
    assert out_z.shape == u.shape and out_z.dtype == u.dtype
    assert jnp.allclose(out_z, ref_z, atol=1e-4, rtol=1e-5)

    # Case 2: periodic derivative along a MIDDLE axis (y), diff_dim=2
    # (exercises the no-transpose sublane kernel).
    y_vector = jnp.arange(Y, dtype=jnp.float32) * 0.1
    weights_y = make_weights_all(y_vector)
    out_y = order2_diff1_unstructure_period(u, weights_y, total_dim=3, diff_dim=2)
    out_y = jax.block_until_ready(out_y)
    ref_y = _reference(u, weights_y, diff_dim=2)
    assert out_y.shape == u.shape and out_y.dtype == u.dtype
    assert jnp.allclose(out_y, ref_y, atol=1e-4, rtol=1e-5)

    print("KERNEL_OK")
</pallas_src>

<mosaic_0001>
module attributes {stable_mosaic.version = 11 : i64} {
  func.func @_diff1_lane_kernel(%arg0: i32, %arg1: memref<64x128xf32, #tpu.memory_space<vmem>>, %arg2: memref<3x128xf32, #tpu.memory_space<vmem>>, %arg3: memref<64x128xf32, #tpu.memory_space<vmem>>) attributes {dimension_semantics = [#tpu.dimension_semantics<parallel>], iteration_bounds = array<i64: 4>, scalar_prefetch = 0 : i64, scratch_operands = 0 : i64, tpu.core_type = #tpu.core_type<tc>, window_params = [{transform_indices = @transform_0, window_bounds = array<i64: 64, 128>}, {pipeline_mode = #tpu.pipeline_mode<synchronous>, transform_indices = @transform_1, window_bounds = array<i64: 3, 128>}, {transform_indices = @transform_2, window_bounds = array<i64: 64, 128>}]} {
    %c0 = arith.constant 0 : index
    %c0_0 = arith.constant 0 : index
    %0 = vector.load %arg1[%c0, %c0_0] : memref<64x128xf32, #tpu.memory_space<vmem>>, vector<64x128xf32>
    %c0_1 = arith.constant 0 : index
    %c0_2 = arith.constant 0 : index
    %1 = vector.load %arg2[%c0_1, %c0_2] : memref<3x128xf32, #tpu.memory_space<vmem>>, vector<3x128xf32>
    %c1_i32 = arith.constant 1 : i32
    %2 = tpu.dynamic_rotate %0 by %c1_i32 dim 1 : vector<64x128xf32>, i32 -> vector<64x128xf32>
    %c127_i32 = arith.constant 127 : i32
    %3 = tpu.dynamic_rotate %0 by %c127_i32 dim 1 : vector<64x128xf32>, i32 -> vector<64x128xf32>
    %4 = vector.extract_strided_slice %1 {offsets = [0, 0], sizes = [1, 128], strides = [1, 1]} : vector<3x128xf32> to vector<1x128xf32>
    %5 = vector.broadcast %4 : vector<1x128xf32> to vector<64x128xf32>
    %6 = arith.mulf %2, %5 : vector<64x128xf32>
    %7 = vector.extract_strided_slice %1 {offsets = [1, 0], sizes = [1, 128], strides = [1, 1]} : vector<3x128xf32> to vector<1x128xf32>
    %8 = vector.broadcast %7 : vector<1x128xf32> to vector<64x128xf32>
    %9 = arith.mulf %0, %8 : vector<64x128xf32>
    %10 = arith.addf %6, %9 : vector<64x128xf32>
    %11 = vector.extract_strided_slice %1 {offsets = [2, 0], sizes = [1, 128], strides = [1, 1]} : vector<3x128xf32> to vector<1x128xf32>
    %12 = vector.broadcast %11 : vector<1x128xf32> to vector<64x128xf32>
    %13 = arith.mulf %3, %12 : vector<64x128xf32>
    %14 = arith.addf %10, %13 : vector<64x128xf32>
    %c0_3 = arith.constant 0 : index
    %c0_4 = arith.constant 0 : index
    %15 = vector.load %arg3[%c0_3, %c0_4] : memref<64x128xf32, #tpu.memory_space<vmem>>, vector<64x128xf32>
    tpu.vector_store %arg3[%c0_3, %c0_4], %14 {strides = array<i32>} : memref<64x128xf32, #tpu.memory_space<vmem>>, vector<64x128xf32>,
    return
  }
  func.func @transform_0(%arg0: i32) -> (i32, i32) {
    %c0_i32 = arith.constant 0 : i32
    %c0_i32_0 = arith.constant 0 : i32
    return %arg0, %c0_i32 : i32, i32
  }
  func.func @transform_1(%arg0: i32) -> (i32, i32) {
    %c0_i32 = arith.constant 0 : i32
    %c0_i32_0 = arith.constant 0 : i32
    %c0_i32_1 = arith.constant 0 : i32
    return %c0_i32, %c0_i32_0 : i32, i32
  }
  func.func @transform_2(%arg0: i32) -> (i32, i32) {
    %c0_i32 = arith.constant 0 : i32
    %c0_i32_0 = arith.constant 0 : i32
    return %arg0, %c0_i32 : i32, i32
  }
}

</mosaic_0001>

<llo_original>
// kernel: tpu_custom_call.1
$region0: #{tpu_custom_call.1}
  #allocation0 [shape = 'u32[]', space=smem, size = 0x4, offset = 0x4, fixed_abs, tag = 'smem constant byte address 0x4 - core index']
  #allocation1 [shape = 'u32[144,128]{1,0:T(1,128)}', space=vmem, size = 0x12000, scoped, tag = 'internal scratch']
  %s0 = inlined_call_operand.hbm [shape: f32[256,128], index: 0, kind: input, shape index: {}]
  %s1 = inlined_call_operand.hbm [shape: f32[3,128], index: 1, kind: input, shape index: {}]
  %s2 = inlined_call_operand.hbm [shape: f32[256,128], index: 2, kind: output, shape index: {}]
  %s3 = sld [smem:[#allocation0]]
  $region49: #{tpu_custom_call.1} parent=0
    _
  %s5 = ssub.s32 1, %s3
  %s6 = scalar_select 0, %s5, %s3
  $region1: #{tpu_custom_call.1} parent=0
    #allocation2 [shape = 'u8[65536]{0}', space=vmem, size = 0x10000, scoped, tag = 'input window, operand 0']
    #allocation3 [shape = 's32[2]{0}', space=sflag, size = 0x8, scoped, tag = 'scoped memory for tpu_custom_call.1']
    #allocation4 [shape = 's32[2]{0}', space=sflag, size = 0x8, scoped, tag = 'scoped memory for tpu_custom_call.1']
    #allocation5 [shape = 'u8[2048]{0}', space=vmem, size = 0x800, scoped, tag = 'input window, operand 1, single buffered']
    #allocation6 [shape = 's32[1]{0}', space=sflag, size = 0x4, scoped, tag = 'scoped memory for tpu_custom_call.1']
    #allocation7 [shape = 'u8[65536]{0}', space=vmem, size = 0x10000, scoped, tag = 'output window, operand 0']
    %7 = vsyncpa [#allocation3], 0
    %s8 = scalar_lea.sflag [#allocation3], 1
    %9 = vsyncpa %s8, 0
    %10 = vsyncpa [#allocation6], 0
    %11 = vsyncpa [#allocation4], 0
    %s12 = scalar_lea.sflag [#allocation4], 1
    %13 = vsyncpa %s12, 0
    loop: start=0, step=1, limit=6
    $region2: #{tpu_custom_call.1} parent=1 // loop_pre_header
      _
    $region3: #{tpu_custom_call.1} parent=1 // loop_header
      %s15 = sphi 0, %s19
      %p16 = scmp.ge.s32.totalorder %s15, 6
      %s25 = sphi 0, %s27
      %s28 = sphi 0, %s25
      %s29 = sphi 0, %s28
      %s45 = sphi 0, %s29
      %s49 = sphi 0, %s49
      %s51 = sphi 0, %s49
      %s52 = sphi 0, %s51
      %s66 = sphi 0, %s52
      %s72 = sphi 0, %s74
      %s75 = sphi 0, %s72
      %s76 = sphi 0, %s75
      %s92 = sphi 0, %s76
    $region4: #{tpu_custom_call.1} parent=1 // loop_header_branch
      %18 = sbr.rel (%p16) target = $region8
    $region5: #{tpu_custom_call.1} parent=1 // loop_body
      %s20 = ssub.s32 %s15, 1
      %s21 = ssub.s32 %s15, 2
      %s22 = sadd.s32 %s15, 1
      %s23 = ssub.s32 %s15, %s22
      %p24 = scmp.eq.s32.totalorder %s23, 0
      %s26 = sadd.s32 %s25, 1
      %s27 = scalar_select %p24, %s25, %s26
      %p30 = pneg %p24
      %p31 = scmp.eq.s32.totalorder %s15, 3
      %p32 = por %p30, %p31
      %p33 = scmp.ne.s32.totalorder %s25, %s28
      %p34 = scmp.eq.s32.totalorder %s15, 0
      %p35 = por %p33, %p34
      %p36 = scmp.ne.s32.totalorder %s25, %s28
      %p37 = scmp.eq.s32.totalorder %s20, 3
      %p38 = por %p36, %p37
      %p39 = scmp.ne.s32.totalorder %s28, %s29
      %p40 = scmp.eq.s32.totalorder %s20, 0
      %p41 = por %p39, %p40
      %p42 = scmp.ne.s32.totalorder %s28, %s29
      %p43 = scmp.eq.s32.totalorder %s21, 3
      %p44 = por %p42, %p43
      %p46 = scmp.ne.s32.totalorder %s29, %s45
      %p47 = scmp.eq.s32.totalorder %s21, 0
      %p48 = por %p46, %p47
      %s50 = sadd.s32 %s49, 1
      %p53 = scmp.eq.s32.totalorder %s15, 3
      %p54 = scmp.ne.s32.totalorder %s49, %s51
      %p55 = scmp.eq.s32.totalorder %s15, 0
      %p56 = por %p54, %p55
      %p57 = scmp.ne.s32.totalorder %s49, %s51
      %p58 = scmp.eq.s32.totalorder %s20, 3
      %p59 = por %p57, %p58
      %p60 = scmp.ne.s32.totalorder %s51, %s52
      %p61 = scmp.eq.s32.totalorder %s20, 0
      %p62 = por %p60, %p61
      %p63 = scmp.ne.s32.totalorder %s51, %s52
      %p64 = scmp.eq.s32.totalorder %s21, 3
      %p65 = por %p63, %p64
      %p67 = scmp.ne.s32.totalorder %s52, %s66
      %p68 = scmp.eq.s32.totalorder %s21, 0
      %p69 = por %p67, %p68
      %s70 = ssub.s32 %s15, %s22
      %p71 = scmp.eq.s32.totalorder %s70, 0
      %s73 = sadd.s32 %s72, 1
      %s74 = scalar_select %p71, %s72, %s73
      %p77 = pneg %p71
      %p78 = scmp.eq.s32.totalorder %s15, 3
      %p79 = por %p77, %p78
      %p80 = scmp.ne.s32.totalorder %s72, %s75
      %p81 = scmp.eq.s32.totalorder %s15, 0
      %p82 = por %p80, %p81
      %p83 = scmp.ne.s32.totalorder %s72, %s75
      %p84 = scmp.eq.s32.totalorder %s20, 3
      %p85 = por %p83, %p84
      %p86 = scmp.ne.s32.totalorder %s75, %s76
      %p87 = scmp.eq.s32.totalorder %s20, 0
      %p88 = por %p86, %p87
      %p89 = scmp.ne.s32.totalorder %s75, %s76
      %p90 = scmp.eq.s32.totalorder %s21, 3
      %p91 = por %p89, %p90
      %p93 = scmp.ne.s32.totalorder %s76, %s92
      %p94 = scmp.eq.s32.totalorder %s21, 0
      %p95 = por %p93, %p94
      %p96 = scmp.le.s32.totalorder 1, %s15
      %p97 = scmp.lt.s32.totalorder %s15, 5
      %p98 = pnand %p96, %p97
      %p99 = pneg %p98
      // Predicated region
      $region9: #{tpu_custom_call.1} parent=5 // pred_check
        _
      $region10: #{tpu_custom_call.1} parent=5 // pred_check_branch
        %101 = sbr.rel (%p98) target = $region12
      $region11: #{tpu_custom_call.1} parent=5 // pred_region
        %s102 = ssub.s32 %s15, 1
        // Predicated region
        $region13: #{tpu_custom_call.1} parent=11 // pred_check
          %p103 = pneg %p62
        $region14: #{tpu_custom_call.1} parent=11 // pred_check_branch
          %105 = sbr.rel (%p103) target = $region16
        $region15: #{tpu_custom_call.1} parent=11 // pred_region
          %s107 = ssub.s32 64, 64
          %108 = vsyncadd [#allocation6], %s107
          %s110 = sshll.u32 [#allocation5], 4
          %s111 = int_to_ptr.vmem [resolvable:$true] %s110
          %113 = dma.hbm_to_vmem [thread:$0]  %s1, 64, %s111, [#allocation6]
        $region16: #{tpu_custom_call.1} parent=11 // pred_fallthru
          _
      $region12: #{tpu_custom_call.1} parent=5 // pred_fallthru
        _
      %p114 = scmp.lt.s32.totalorder %s15, 4
      // Predicated region
      $region17: #{tpu_custom_call.1} parent=5 // pred_check
        %p115 = pneg %p114
      $region18: #{tpu_custom_call.1} parent=5 // pred_check_branch
        %117 = sbr.rel (%p115) target = $region20
      $region19: #{tpu_custom_call.1} parent=5 // pred_region
        // Predicated region
        $region21: #{tpu_custom_call.1} parent=19 // pred_check
          %p118 = pneg %p35
        $region22: #{tpu_custom_call.1} parent=19 // pred_check_branch
          %120 = sbr.rel (%p118) target = $region24
        $region23: #{tpu_custom_call.1} parent=19 // pred_region
          %s121 = sand.u32 %s25, 1
          %s122 = scalar_lea.sflag [#allocation3], %s121
          %s123 = sand.u32 %s25, 1
          %s124 = smul.addr %s123, 64
          %s125 = scalar_lea.vmem [#allocation2], %s124
          %s126 = smul.u32 8, %s15
          %s128 = ssub.s32 1024, 1024
          %129 = vsyncadd %s122, %s128
          %s130 = smul.addr %s126, 128
          %s131 = scalar_lea.hbm %s0, %s130
          %s132 = sshll.u32 %s125, 4
          %s133 = int_to_ptr.vmem [resolvable:$true] %s132
          %138 = dma.hbm_to_vmem [thread:$0]  %s131, 1024, %s133, %s122, 128, 128, 8
        $region24: #{tpu_custom_call.1} parent=19 // pred_fallthru
          _
      $region20: #{tpu_custom_call.1} parent=5 // pred_fallthru
        _
      %p139 = scmp.le.s32.totalorder 1, %s15
      %p140 = scmp.lt.s32.totalorder %s15, 5
      %p141 = pnand %p139, %p140
      %p142 = pneg %p141
      // Predicated region
      $region25: #{tpu_custom_call.1} parent=5 // pred_check
        _
      $region26: #{tpu_custom_call.1} parent=5 // pred_check_branch
        %144 = sbr.rel (%p141) target = $region28
      $region27: #{tpu_custom_call.1} parent=5 // pred_region
        %s145 = ssub.s32 %s15, 1
        %s146 = sand.u32 %s28, 1
        %s147 = scalar_lea.sflag [#allocation3], %s146
        %s148 = sand.u32 %s28, 1
        %s149 = smul.addr %s148, 64
        %s150 = scalar_lea.vmem [#allocation2], %s149
        // Predicated region
        $region29: #{tpu_custom_call.1} parent=27 // pred_check
          %p151 = pneg %p41
        $region30: #{tpu_custom_call.1} parent=27 // pred_check_branch
          %153 = sbr.rel (%p151) target = $region32
        $region31: #{tpu_custom_call.1} parent=27 // pred_region
          %154 = dma.done %s147, 1024
        $region32: #{tpu_custom_call.1} parent=27 // pred_fallthru
          _
        // Predicated region
        $region33: #{tpu_custom_call.1} parent=27 // pred_check
          %p155 = pneg %p62
        $region34: #{tpu_custom_call.1} parent=27 // pred_check_branch
          %157 = sbr.rel (%p155) target = $region36
        $region35: #{tpu_custom_call.1} parent=27 // pred_region
          %158 = dma.done [#allocation6], 64
        $region36: #{tpu_custom_call.1} parent=27 // pred_fallthru
          _
        %s159 = sand.u32 %s28, 1
        %s160 = scalar_lea.sflag [#allocation3], %s159
        %s161 = sand.u32 %s28, 1
        %s162 = smul.addr %s161, 64
        %s163 = scalar_lea.vmem [#allocation2], %s162
        %p164 = pneg %p41
        %p165 = pneg %p38
        %p166 = pneg %p62
        %p167 = pneg %p59
        %p168 = pneg %p88
        %p169 = pneg %p85
        %s170 = sand.u32 %s75, 1
        %s171 = scalar_lea.sflag [#allocation4], %s170
        %s172 = sand.u32 %s75, 1
        %s173 = smul.addr %s172, 64
        %s174 = scalar_lea.vmem [#allocation7], %s173
        %s175 = smul.u32 8, %s20
        %s176 = smul.u32 8, %s20
        %v177 = vld [vmem:[%s150] sm:$0xff]
        %v178 = vld [vmem:[%s150 + $0x8] sm:$0xff]
        %v179 = vld [vmem:[%s150 + $0x10] sm:$0xff]
        %v180 = vld [vmem:[%s150 + $0x18] sm:$0xff]
        %v181 = vld [vmem:[%s150 + $0x20] sm:$0xff]
        %v182 = vld [vmem:[%s150 + $0x28] sm:$0xff]
        %v183 = vld [vmem:[%s150 + $0x30] sm:$0xff]
        %v184 = vld [vmem:[%s150 + $0x38] sm:$0xff]
        %v185 = vld [vmem:[#allocation5] sm:$0x7]
        %186 = vrot.lane.b32.xlu0 %v177, 1
        %v187 = vpop.permute.xlu0 %186
        %188 = vrot.lane.b32.xlu0 %v178, 1
        %v189 = vpop.permute.xlu0 %188
        %190 = vrot.lane.b32.xlu0 %v179, 1
        %v191 = vpop.permute.xlu0 %190
        %192 = vrot.lane.b32.xlu0 %v180, 1
        %v193 = vpop.permute.xlu0 %192
        %194 = vrot.lane.b32.xlu0 %v181, 1
        %v195 = vpop.permute.xlu0 %194
        %196 = vrot.lane.b32.xlu0 %v182, 1
        %v197 = vpop.permute.xlu0 %196
        %198 = vrot.lane.b32.xlu0 %v183, 1
        %v199 = vpop.permute.xlu0 %198
        %200 = vrot.lane.b32.xlu0 %v184, 1
        %v201 = vpop.permute.xlu0 %200
        %202 = vrot.lane.b32.xlu0 %v177, 127
        %v203 = vpop.permute.xlu0 %202
        %204 = vrot.lane.b32.xlu0 %v178, 127
        %v205 = vpop.permute.xlu0 %204
        %206 = vrot.lane.b32.xlu0 %v179, 127
        %v207 = vpop.permute.xlu0 %206
        %208 = vrot.lane.b32.xlu0 %v180, 127
        %v209 = vpop.permute.xlu0 %208
        %210 = vrot.lane.b32.xlu0 %v181, 127
        %v211 = vpop.permute.xlu0 %210
        %212 = vrot.lane.b32.xlu0 %v182, 127
        %v213 = vpop.permute.xlu0 %212
        %214 = vrot.lane.b32.xlu0 %v183, 127
        %v215 = vpop.permute.xlu0 %214
        %216 = vrot.lane.b32.xlu0 %v184, 127
        %v217 = vpop.permute.xlu0 %216
        %v218 = vlaneseq
        %v219 = vshrl.u32 %v218, 7
        %v220 = vsub.s32 0, %v219
        %v221 = vrot.slane %v185, %v220
        %v222 = vmul.f32 %v187, %v221
        %v223 = vmul.f32 %v189, %v221
        %v224 = vmul.f32 %v191, %v221
        %v225 = vmul.f32 %v193, %v221
        %v226 = vmul.f32 %v195, %v221
        %v227 = vmul.f32 %v197, %v221
        %v228 = vmul.f32 %v199, %v221
        %v229 = vmul.f32 %v201, %v221
        %v230 = vlaneseq
        %v231 = vshrl.u32 %v230, 7
        %v232 = vsub.s32 1, %v231
        %v233 = vrot.slane %v185, %v232
        %v234 = vmul.f32 %v177, %v233
        %v235 = vmul.f32 %v178, %v233
        %v236 = vmul.f32 %v179, %v233
        %v237 = vmul.f32 %v180, %v233
        %v238 = vmul.f32 %v181, %v233
        %v239 = vmul.f32 %v182, %v233
        %v240 = vmul.f32 %v183, %v233
        %v241 = vmul.f32 %v184, %v233
        %v242 = vadd.f32 %v222, %v234
        %v243 = vadd.f32 %v223, %v235
        %v244 = vadd.f32 %v224, %v236
        %v245 = vadd.f32 %v225, %v237
        %v246 = vadd.f32 %v226, %v238
        %v247 = vadd.f32 %v227, %v239
        %v248 = vadd.f32 %v228, %v240
        %v249 = vadd.f32 %v229, %v241
        %v250 = vlaneseq
        %v251 = vshrl.u32 %v250, 7
        %v252 = vsub.s32 2, %v251
        %v253 = vrot.slane %v185, %v252
        %v254 = vmul.f32 %v203, %v253
        %v255 = vmul.f32 %v205, %v253
        %v256 = vmul.f32 %v207, %v253
        %v257 = vmul.f32 %v209, %v253
        %v258 = vmul.f32 %v211, %v253
        %v259 = vmul.f32 %v213, %v253
        %v260 = vmul.f32 %v215, %v253
        %v261 = vmul.f32 %v217, %v253
        %v262 = vadd.f32 %v242, %v254
        %v263 = vadd.f32 %v243, %v255
        %v264 = vadd.f32 %v244, %v256
        %v265 = vadd.f32 %v245, %v257
        %v266 = vadd.f32 %v246, %v258
        %v267 = vadd.f32 %v247, %v259
        %v268 = vadd.f32 %v248, %v260
        %v269 = vadd.f32 %v249, %v261
        %270 = vst [vmem:[%s174] sm:$0xff] %v262
        %271 = vst [vmem:[%s174 + $0x8] sm:$0xff] %v263
        %272 = vst [vmem:[%s174 + $0x10] sm:$0xff] %v264
        %273 = vst [vmem:[%s174 + $0x18] sm:$0xff] %v265
        %274 = vst [vmem:[%s174 + $0x20] sm:$0xff] %v266
        %275 = vst [vmem:[%s174 + $0x28] sm:$0xff] %v267
        %276 = vst [vmem:[%s174 + $0x30] sm:$0xff] %v268
        %277 = vst [vmem:[%s174 + $0x38] sm:$0xff] %v269
        %s278 = sand.u32 %s75, 1
        %s279 = scalar_lea.sflag [#allocation4], %s278
        %s280 = sand.u32 %s75, 1
        %s281 = smul.addr %s280, 64
        %s282 = scalar_lea.vmem [#allocation7], %s281
        // Predicated region
        $region37: #{tpu_custom_call.1} parent=27 // pred_check
          %p283 = pneg %p85
        $region38: #{tpu_custom_call.1} parent=27 // pred_check_branch
          %285 = sbr.rel (%p283) target = $region40
        $region39: #{tpu_custom_call.1} parent=27 // pred_region
          %s286 = smul.u32 8, %s20
          %s288 = ssub.s32 1024, 1024
          %289 = vsyncadd %s279, %s288
          %s290 = smul.addr %s286, 128
          %s291 = scalar_lea.hbm %s2, %s290
          %s292 = sshll.u32 %s282, 4
          %s293 = int_to_ptr.vmem [resolvable:$true] %s292
          %298 = dma.vmem_to_hbm [thread:$0]  %s293, 1024, %s291, %s279, 128, 128, 8
        $region40: #{tpu_custom_call.1} parent=27 // pred_fallthru
          _
      $region28: #{tpu_custom_call.1} parent=5 // pred_fallthru
        _
      %p299 = scmp.le.s32.totalorder 2, %s15
      // Predicated region
      $region41: #{tpu_custom_call.1} parent=5 // pred_check
        %p300 = pneg %p299
      $region42: #{tpu_custom_call.1} parent=5 // pred_check_branch
        %302 = sbr.rel (%p300) target = $region44
      $region43: #{tpu_custom_call.1} parent=5 // pred_region
        %s303 = ssub.s32 %s15, 2
        // Predicated region
        $region45: #{tpu_custom_call.1} parent=43 // pred_check
          %p304 = pneg %p91
        $region46: #{tpu_custom_call.1} parent=43 // pred_check_branch
          %306 = sbr.rel (%p304) target = $region48
        $region47: #{tpu_custom_call.1} parent=43 // pred_region
          %s307 = sand.u32 %s76, 1
          %s308 = scalar_lea.sflag [#allocation4], %s307
          %s309 = sand.u32 %s76, 1
          %s310 = smul.addr %s309, 64
          %s311 = scalar_lea.vmem [#allocation7], %s310
          %312 = dma.done %s308, 1024
        $region48: #{tpu_custom_call.1} parent=43 // pred_fallthru
          _
      $region44: #{tpu_custom_call.1} parent=5 // pred_fallthru
        _
    $region6: #{tpu_custom_call.1} parent=1 // loop_footer
      %s19 = sadd.s32 1, %s15
    $region7: #{tpu_custom_call.1} parent=1 // loop_footer_branch
      %14 = sbr.rel target = $region3
    $region8: #{tpu_custom_call.1} parent=1 // loop_exit
      _
    %313 = vsyncpa [#allocation3], 1
    %s314 = scalar_lea.sflag [#allocation3], 1
    %315 = vsyncpa %s314, 1
    %316 = vsyncpa [#allocation6], 1
    %317 = vsyncpa [#allocation4], 1
    %s318 = scalar_lea.sflag [#allocation4], 1
    %319 = vsyncpa %s318, 1

</llo_original>
